<compile_context>
chip_gen: v5e
topology: v5e:2x2
jax: 0.10.0
libtpu: 0.0.40
codegen_flags: <defaults>
</compile_context>

<pallas_src>
import jax
import jax.numpy as jnp
from jax.experimental import pallas as pl
from jax.experimental.pallas import tpu as pltpu

LANE = 128


# ----------------------------------------------------------------------------
# Pallas kernel: fused 1x1-convs (channel-contraction matmuls, BN folded) +
# relu + sigmoid gate + elementwise multiply over (bN, channels, pixel-tile)
# blocks.  Pixels sit on the lane axis; channels on the sublane axis.
# ----------------------------------------------------------------------------
def _attention_block_kernel(g_ref, x_ref,
                            wg_ref, wx_ref, bgx_ref,
                            wpsi_ref, bpsi_ref,
                            o_ref):
    # Weights / biases are grid-resident; load once.
    wg = wg_ref[...]                               # (F_int, F_g)
    wx = wx_ref[...]                               # (F_int, F_l)
    bgx = bgx_ref[...]                             # (F_int, 1)
    wpsi = wpsi_ref[...]                           # (F_int, 1)
    bpsi = bpsi_ref[0]                             # scalar (SMEM)

    bN = g_ref.shape[0]
    for b in range(bN):                            # small static unroll
        g = g_ref[b].astype(jnp.float32)           # (F_g, tile_px)
        x = x_ref[b].astype(jnp.float32)           # (F_l, tile_px)

        # g1 + x1 with both (folded) biases pre-summed in the wrapper.
        h = (jnp.dot(wg, g, preferred_element_type=jnp.float32)
             + jnp.dot(wx, x, preferred_element_type=jnp.float32)
             + bgx)                                # (F_int, tile_px)
        h = jnp.maximum(h, 0.0)                    # ReLU

        # psi projection: VPU multiply + cross-sublane reduce (XLU) instead of
        # a 1-row MXU matmul (MXU tile would be 127/255 wasted).
        psi_pre = jnp.sum(h * wpsi, axis=0, keepdims=True) + bpsi
        psi = jax.nn.sigmoid(psi_pre)              # (1, tile_px)

        o_ref[b] = (x * psi).astype(o_ref.dtype)   # broadcast over channels


# ----------------------------------------------------------------------------
# Host-side helpers
# ----------------------------------------------------------------------------
def _fold_bn(w, b, gamma, beta, mean, var, eps=1e-5):
    """Fold eval-mode BatchNorm into a preceding 1x1 conv (matmul form).

    w: (C_in, C_out), b: (C_out,).  Returns folded (w, b)."""
    scale = gamma / jnp.sqrt(var + eps)
    return w * scale[None, :], (b - mean) * scale + beta


def _round_up(v, m):
    return ((v + m - 1) // m) * m


def _largest_divisor_leq(n, cap):
    cap = max(1, min(n, cap))
    for d in range(cap, 0, -1):
        if n % d == 0:
            return d
    return 1


def _pick_tile_px(hw, max_px):
    """Return (tile_px, hw_padded): tile_px is a multiple of 128 (<= max_px)
    that exactly tiles hw_padded, keeping the padding overhead small."""
    hw128 = _round_up(hw, LANE)
    if hw128 <= max_px:
        return hw128, hw128
    best = None
    t = (max_px // LANE) * LANE
    while t >= LANE:
        padded = _round_up(hw, t)
        if padded - hw128 <= hw128 // 16:          # <= ~6% padding waste
            return t, padded
        if best is None or padded < best[1]:
            best = (t, padded)
        t -= LANE
    return best


def attention_block(g, x, params, *, vmem_budget_bytes=40 << 20, io_dtype=None):
    """g, x: NCHW float arrays.  Returns x * psi in NCHW (same dtype as x)."""
    N, F_g, H, W = g.shape
    _, F_l, _, _ = x.shape
    F_int = params["wg"].shape[1]
    HW = H * W

    # Fold BN affine transforms into the conv weights/biases (plain JAX glue).
    wg, bg = _fold_bn(params["wg"], params["bg"],
                      params["bn_g_gamma"], params["bn_g_beta"],
                      params["bn_g_mean"], params["bn_g_var"])
    wx, bx = _fold_bn(params["wx"], params["bx"],
                      params["bn_x_gamma"], params["bn_x_beta"],
                      params["bn_x_mean"], params["bn_x_var"])
    wpsi, bpsi = _fold_bn(params["wpsi"], params["bpsi"],
                          params["bn_p_gamma"], params["bn_p_beta"],
                          params["bn_p_mean"], params["bn_p_var"])

    # Transposed weights for the (channels, pixels) layout: out = W^T @ act.
    wg_t = wg.T.astype(jnp.float32)            # (F_int, F_g)
    wx_t = wx.T.astype(jnp.float32)            # (F_int, F_l)
    wpsi_col = wpsi.astype(jnp.float32)        # (F_int, 1) column for VPU reduce
    b_gx = (bg + bx).reshape(F_int, 1).astype(jnp.float32)
    bpsi1 = bpsi.reshape(1,).astype(jnp.float32)   # scalar via SMEM

    io_dt = jnp.dtype(io_dtype) if io_dtype is not None else jnp.dtype(x.dtype)
    io_isz = io_dt.itemsize

    # --- tile sizing from an explicit VMEM budget (per grid step) -----------
    # Double-buffered g/x inputs + double-buffered output + f32 'h' scratch.
    per_px_bytes = (2 * (F_g + F_l) * io_isz + 2 * F_l * io_isz
                    + F_int * 4 + 16)
    px_budget = (vmem_budget_bytes // per_px_bytes) // LANE * LANE
    px_budget = max(LANE, min(64 * 1024, px_budget))

    tile_px, hw_pad = _pick_tile_px(HW, px_budget)

    if tile_px == hw_pad:
        # Whole (padded) image fits in one pixel tile -> fold several images
        # per grid step to amortize the ~0.35us per-step overhead, but keep
        # >= 2 grid steps when N >= 2 so both v7x TensorCores get work.
        bN_cap = min(px_budget // hw_pad, 8)
        if N >= 2:
            bN_cap = min(bN_cap, N // 2)
        bN = _largest_divisor_leq(N, bN_cap)
    else:
        bN = 1

    # Degenerate 1-step grid (only possible when N == 1): split the pixel tile.
    if (N // bN) * (hw_pad // tile_px) == 1 and hw_pad % (2 * LANE) == 0:
        tile_px = hw_pad // 2

    # Free row-major views: NCHW -> (N, C, H*W); pad pixels to the tiled size.
    g3 = g.reshape(N, F_g, HW)
    x3 = x.reshape(N, F_l, HW)
    if io_dtype is not None:
        g3 = g3.astype(io_dt)
        x3 = x3.astype(io_dt)
    pad = hw_pad - HW
    if pad:
        g3 = jnp.pad(g3, ((0, 0), (0, 0), (0, pad)))
        x3 = jnp.pad(x3, ((0, 0), (0, 0), (0, pad)))

    grid = (N // bN, hw_pad // tile_px)

    weight_bytes = (F_int * (F_g + F_l) + 2 * F_int + 8) * 4
    footprint = per_px_bytes * bN * tile_px + weight_bytes
    vmem_limit = int(max(32 << 20, min(100 << 20, footprint + (8 << 20))))

    out3 = pl.pallas_call(
        _attention_block_kernel,
        out_shape=jax.ShapeDtypeStruct((N, F_l, hw_pad), io_dt),
        grid_spec=pltpu.PrefetchScalarGridSpec(
            num_scalar_prefetch=0,
            grid=grid,
            in_specs=[
                # activations: (bN, channels, pixel-tile), pixels on lanes
                pl.BlockSpec((bN, F_g, tile_px), lambda n, p: (n, 0, p)),
                pl.BlockSpec((bN, F_l, tile_px), lambda n, p: (n, 0, p)),
                # folded weights / biases, resident across the whole grid
                pl.BlockSpec((F_int, F_g), lambda n, p: (0, 0)),
                pl.BlockSpec((F_int, F_l), lambda n, p: (0, 0)),
                pl.BlockSpec((F_int, 1), lambda n, p: (0, 0)),
                pl.BlockSpec((F_int, 1), lambda n, p: (0, 0)),
                # psi bias: single f32 scalar in SMEM
                pl.BlockSpec(memory_space=pltpu.MemorySpace.SMEM),
            ],
            out_specs=pl.BlockSpec((bN, F_l, tile_px), lambda n, p: (n, 0, p)),
        ),
        compiler_params=pltpu.CompilerParams(
            dimension_semantics=("parallel", "parallel"),
            vmem_limit_bytes=vmem_limit),
    )(g3, x3, wg_t, wx_t, b_gx, wpsi_col, bpsi1)

    out = out3[:, :, :HW].astype(x.dtype).reshape(N, F_l, H, W)
    return out


# ----------------------------------------------------------------------------
# Deterministic parameter initialization (shapes follow Attention_block.__init__)
# ----------------------------------------------------------------------------
def init_params(key, F_g, F_l, F_int):
    ks = jax.random.split(key, 9)
    return {
        # Conv2d(F_g, F_int, 1) -> matmul weight (F_g, F_int) + bias
        "wg": 0.2 * jax.random.normal(ks[0], (F_g, F_int), jnp.float32),
        "bg": 0.1 * jax.random.normal(ks[1], (F_int,), jnp.float32),
        # Conv2d(F_l, F_int, 1)
        "wx": 0.2 * jax.random.normal(ks[2], (F_l, F_int), jnp.float32),
        "bx": 0.1 * jax.random.normal(ks[3], (F_int,), jnp.float32),
        # Conv2d(F_int, 1, 1)
        "wpsi": 0.2 * jax.random.normal(ks[4], (F_int, 1), jnp.float32),
        "bpsi": 0.1 * jax.random.normal(ks[5], (1,), jnp.float32),
        # BatchNorm2d(F_int) for W_g branch (eval-mode running stats)
        "bn_g_gamma": 1.0 + 0.1 * jax.random.normal(ks[6], (F_int,), jnp.float32),
        "bn_g_beta": jnp.zeros((F_int,), jnp.float32) + 0.05,
        "bn_g_mean": 0.1 * jnp.ones((F_int,), jnp.float32),
        "bn_g_var": jnp.ones((F_int,), jnp.float32) * 1.2,
        # BatchNorm2d(F_int) for W_x branch
        "bn_x_gamma": 1.0 + 0.1 * jax.random.normal(ks[7], (F_int,), jnp.float32),
        "bn_x_beta": jnp.zeros((F_int,), jnp.float32) - 0.05,
        "bn_x_mean": -0.1 * jnp.ones((F_int,), jnp.float32),
        "bn_x_var": jnp.ones((F_int,), jnp.float32) * 0.8,
        # BatchNorm2d(1) for psi branch
        "bn_p_gamma": 1.0 + 0.1 * jax.random.normal(ks[8], (1,), jnp.float32),
        "bn_p_beta": jnp.zeros((1,), jnp.float32),
        "bn_p_mean": jnp.zeros((1,), jnp.float32),
        "bn_p_var": jnp.ones((1,), jnp.float32),
    }


def _reference(g, x, params, eps=1e-5):
    """Pure-JAX reference of the same (eval-mode BN) forward pass."""
    def conv_bn(inp, w, b, gamma, beta, mean, var):
        y = jnp.einsum("nchw,co->nohw", inp, w) + b[None, :, None, None]
        s = gamma / jnp.sqrt(var + eps)
        return (y - mean[None, :, None, None]) * s[None, :, None, None] \
               + beta[None, :, None, None]
    g1 = conv_bn(g, params["wg"], params["bg"], params["bn_g_gamma"],
                 params["bn_g_beta"], params["bn_g_mean"], params["bn_g_var"])
    x1 = conv_bn(x, params["wx"], params["bx"], params["bn_x_gamma"],
                 params["bn_x_beta"], params["bn_x_mean"], params["bn_x_var"])
    h = jnp.maximum(g1 + x1, 0.0)
    p = conv_bn(h, params["wpsi"], params["bpsi"], params["bn_p_gamma"],
                params["bn_p_beta"], params["bn_p_mean"], params["bn_p_var"])
    return x * jax.nn.sigmoid(p)


if __name__ == "__main__":
    # TODO(synk): training-mode BatchNorm (batch-statistics path) is not
    # implemented; the kernel realizes the eval/inference forward pass.
    N, F_g, F_l, F_int, H, W = 2, 4, 4, 32, 16, 16

    key = jax.random.PRNGKey(0)
    kg, kx, kp = jax.random.split(key, 3)
    g = jax.random.normal(kg, (N, F_g, H, W), jnp.float32)
    x = jax.random.normal(kx, (N, F_l, H, W), jnp.float32)
    params = init_params(kp, F_g, F_l, F_int)

    out = attention_block(g, x, params)
    out = jax.block_until_ready(out)
    ref = _reference(g, x, params)
    assert out.shape == (N, F_l, H, W)
    assert jnp.allclose(out, ref, atol=1e-4, rtol=1e-4), \
        f"max abs err {jnp.max(jnp.abs(out - ref))}"

    # Extra robustness check: odd spatial size exercises the 128-lane padding
    # path (no full-HW fallback blocks, lane-dense stores).
    H2, W2 = 9, 9
    g2 = jax.random.normal(jax.random.PRNGKey(1), (N, F_g, H2, W2), jnp.float32)
    x2 = jax.random.normal(jax.random.PRNGKey(2), (N, F_l, H2, W2), jnp.float32)
    out2 = jax.block_until_ready(attention_block(g2, x2, params))
    ref2 = _reference(g2, x2, params)
    assert jnp.allclose(out2, ref2, atol=1e-4, rtol=1e-4), \
        f"max abs err (padded path) {jnp.max(jnp.abs(out2 - ref2))}"

    print("KERNEL_OK")
</pallas_src>

<mosaic_0001>
module attributes {stable_mosaic.version = 11 : i64} {
  func.func @_attention_block_kernel(%arg0: i32, %arg1: i32, %arg2: memref<1x4x256xf32, #tpu.memory_space<vmem>>, %arg3: memref<1x4x256xf32, #tpu.memory_space<vmem>>, %arg4: memref<32x4xf32, #tpu.memory_space<vmem>>, %arg5: memref<32x4xf32, #tpu.memory_space<vmem>>, %arg6: memref<32x1xf32, #tpu.memory_space<vmem>>, %arg7: memref<32x1xf32, #tpu.memory_space<vmem>>, %arg8: memref<1xf32, #tpu.memory_space<smem>>, %arg9: memref<1x4x256xf32, #tpu.memory_space<vmem>>) attributes {dimension_semantics = [#tpu.dimension_semantics<parallel>, #tpu.dimension_semantics<parallel>], iteration_bounds = array<i64: 2, 1>, scalar_prefetch = 0 : i64, scratch_operands = 0 : i64, tpu.core_type = #tpu.core_type<tc>, window_params = [{transform_indices = @transform_0, window_bounds = array<i64: 1, 4, 256>}, {transform_indices = @transform_1, window_bounds = array<i64: 1, 4, 256>}, {pipeline_mode = #tpu.pipeline_mode<synchronous>, transform_indices = @transform_2, window_bounds = array<i64: 32, 4>}, {pipeline_mode = #tpu.pipeline_mode<synchronous>, transform_indices = @transform_3, window_bounds = array<i64: 32, 4>}, {pipeline_mode = #tpu.pipeline_mode<synchronous>, transform_indices = @transform_4, window_bounds = array<i64: 32, 1>}, {pipeline_mode = #tpu.pipeline_mode<synchronous>, transform_indices = @transform_5, window_bounds = array<i64: 32, 1>}, {transform_indices = @transform_6, window_bounds = array<i64: 1>}, {transform_indices = @transform_7, window_bounds = array<i64: 1, 4, 256>}]} {
    %c0 = arith.constant 0 : index
    %c0_0 = arith.constant 0 : index
    %0 = vector.load %arg4[%c0, %c0_0] : memref<32x4xf32, #tpu.memory_space<vmem>>, vector<32x4xf32>
    %c0_1 = arith.constant 0 : index
    %c0_2 = arith.constant 0 : index
    %1 = vector.load %arg5[%c0_1, %c0_2] : memref<32x4xf32, #tpu.memory_space<vmem>>, vector<32x4xf32>
    %c0_3 = arith.constant 0 : index
    %c0_4 = arith.constant 0 : index
    %2 = vector.load %arg6[%c0_3, %c0_4] : memref<32x1xf32, #tpu.memory_space<vmem>>, vector<32x1xf32>
    %c0_5 = arith.constant 0 : index
    %c0_6 = arith.constant 0 : index
    %3 = vector.load %arg7[%c0_5, %c0_6] : memref<32x1xf32, #tpu.memory_space<vmem>>, vector<32x1xf32>
    %c0_7 = arith.constant 0 : index
    %4 = memref.load %arg8[%c0_7] : memref<1xf32, #tpu.memory_space<smem>>
    %c0_8 = arith.constant 0 : index
    %c0_9 = arith.constant 0 : index
    %c0_10 = arith.constant 0 : index
    %5 = vector.load %arg2[%c0_8, %c0_9, %c0_10] : memref<1x4x256xf32, #tpu.memory_space<vmem>>, vector<1x4x256xf32>
    %6 = vector.shape_cast %5 : vector<1x4x256xf32> to vector<4x256xf32>
    %c0_11 = arith.constant 0 : index
    %c0_12 = arith.constant 0 : index
    %c0_13 = arith.constant 0 : index
    %7 = vector.load %arg3[%c0_11, %c0_12, %c0_13] : memref<1x4x256xf32, #tpu.memory_space<vmem>>, vector<1x4x256xf32>
    %8 = vector.shape_cast %7 : vector<1x4x256xf32> to vector<4x256xf32>
    %cst = arith.constant dense<0.000000e+00> : vector<32x256xf32>
    %9 = tpu.matmul %0, %6, %cst {dimension_numbers = #tpu.dot_dimension_numbers<[1], [0], [0], [1], [0, 0, 1, 1], [], []>} : vector<32x4xf32>, vector<4x256xf32>, vector<32x256xf32> -> vector<32x256xf32>
    %cst_14 = arith.constant dense<0.000000e+00> : vector<32x256xf32>
    %10 = tpu.matmul %1, %8, %cst_14 {dimension_numbers = #tpu.dot_dimension_numbers<[1], [0], [0], [1], [0, 0, 1, 1], [], []>} : vector<32x4xf32>, vector<4x256xf32>, vector<32x256xf32> -> vector<32x256xf32>
    %11 = arith.addf %9, %10 : vector<32x256xf32>
    %12 = vector.broadcast %2 : vector<32x1xf32> to vector<32x256xf32>
    %13 = arith.addf %11, %12 : vector<32x256xf32>
    %cst_15 = arith.constant 0.000000e+00 : f32
    %14 = vector.broadcast %cst_15 : f32 to vector<32x256xf32>
    %15 = arith.maximumf %13, %14 : vector<32x256xf32>
    %16 = vector.broadcast %3 : vector<32x1xf32> to vector<32x256xf32>
    %17 = arith.mulf %15, %16 : vector<32x256xf32>
    %cst_16 = arith.constant dense<0.000000e+00> : vector<256xf32>
    %18 = vector.multi_reduction <add>, %17, %cst_16 [0] : vector<32x256xf32> to vector<256xf32>
    %19 = vector.shape_cast %18 : vector<256xf32> to vector<1x256xf32>
    %20 = vector.broadcast %4 : f32 to vector<1x256xf32>
    %21 = arith.addf %19, %20 : vector<1x256xf32>
    %22 = arith.negf %21 : vector<1x256xf32>
    %23 = math.exp %22 : vector<1x256xf32>
    %cst_17 = arith.constant 1.000000e+00 : f32
    %24 = vector.broadcast %cst_17 : f32 to vector<1x256xf32>
    %25 = arith.addf %24, %23 : vector<1x256xf32>
    %26 = arith.divf %24, %25 : vector<1x256xf32>
    %27 = vector.broadcast %26 : vector<1x256xf32> to vector<4x256xf32>
    %28 = arith.mulf %8, %27 : vector<4x256xf32>
    %c0_18 = arith.constant 0 : index
    %c0_19 = arith.constant 0 : index
    %c0_20 = arith.constant 0 : index
    %29 = vector.load %arg9[%c0_18, %c0_19, %c0_20] : memref<1x4x256xf32, #tpu.memory_space<vmem>>, vector<1x4x256xf32>
    %30 = vector.shape_cast %29 : vector<1x4x256xf32> to vector<4x256xf32>
    %31 = vector.shape_cast %28 : vector<4x256xf32> to vector<1x4x256xf32>
    tpu.vector_store %arg9[%c0_18, %c0_19, %c0_20], %31 {strides = array<i32>} : memref<1x4x256xf32, #tpu.memory_space<vmem>>, vector<1x4x256xf32>,
    return
  }
  func.func @transform_0(%arg0: i32, %arg1: i32) -> (i32, i32, i32) {
    %c0_i32 = arith.constant 0 : i32
    %c0_i32_0 = arith.constant 0 : i32
    return %arg0, %c0_i32, %arg1 : i32, i32, i32
  }
  func.func @transform_1(%arg0: i32, %arg1: i32) -> (i32, i32, i32) {
    %c0_i32 = arith.constant 0 : i32
    %c0_i32_0 = arith.constant 0 : i32
    return %arg0, %c0_i32, %arg1 : i32, i32, i32
  }
  func.func @transform_2(%arg0: i32, %arg1: i32) -> (i32, i32) {
    %c0_i32 = arith.constant 0 : i32
    %c0_i32_0 = arith.constant 0 : i32
    %c0_i32_1 = arith.constant 0 : i32
    return %c0_i32, %c0_i32_0 : i32, i32
  }
  func.func @transform_3(%arg0: i32, %arg1: i32) -> (i32, i32) {
    %c0_i32 = arith.constant 0 : i32
    %c0_i32_0 = arith.constant 0 : i32
    %c0_i32_1 = arith.constant 0 : i32
    return %c0_i32, %c0_i32_0 : i32, i32
  }
  func.func @transform_4(%arg0: i32, %arg1: i32) -> (i32, i32) {
    %c0_i32 = arith.constant 0 : i32
    %c0_i32_0 = arith.constant 0 : i32
    %c0_i32_1 = arith.constant 0 : i32
    return %c0_i32, %c0_i32_0 : i32, i32
  }
  func.func @transform_5(%arg0: i32, %arg1: i32) -> (i32, i32) {
    %c0_i32 = arith.constant 0 : i32
    %c0_i32_0 = arith.constant 0 : i32
    %c0_i32_1 = arith.constant 0 : i32
    return %c0_i32, %c0_i32_0 : i32, i32
  }
  func.func @transform_6(%arg0: i32, %arg1: i32) -> i32 {
    %c0_i32 = arith.constant 0 : i32
    %c0_i32_0 = arith.constant 0 : i32
    return %c0_i32 : i32
  }
  func.func @transform_7(%arg0: i32, %arg1: i32) -> (i32, i32, i32) {
    %c0_i32 = arith.constant 0 : i32
    %c0_i32_0 = arith.constant 0 : i32
    return %arg0, %c0_i32, %arg1 : i32, i32, i32
  }
}

</mosaic_0001>

<llo_original>
// kernel: tpu_custom_call.1
$region0: #{tpu_custom_call.1}
  #allocation0 [shape = 'u32[]', space=smem, size = 0x4, offset = 0x4, fixed_abs, tag = 'smem constant byte address 0x4 - core index']
  #allocation1 [shape = 'u32[72,128]{1,0:T(1,128)}', space=vmem, size = 0x9000, scoped, tag = 'internal scratch']
  #allocation2 [shape = 'f32[1]{0:T(128)S(6)}', space=smem, size = 0x200, scoped, tag = 'scoped memory for tpu_custom_call.1']
  %s0 = inlined_call_operand.vmem [shape: f32[2,4,256], index: 0, kind: input, shape index: {}]
  %s1 = inlined_call_operand.vmem [shape: f32[2,4,256], index: 1, kind: input, shape index: {}]
  %s2 = inlined_call_operand.vmem [shape: f32[32,4], index: 2, kind: input, shape index: {}]
  %s3 = inlined_call_operand.vmem [shape: f32[32,4], index: 3, kind: input, shape index: {}]
  %s4 = inlined_call_operand.vmem [shape: f32[32,1], index: 4, kind: input, shape index: {}]
  %s5 = inlined_call_operand.vmem [shape: f32[32,1], index: 5, kind: input, shape index: {}]
  %s6 = inlined_call_operand.<no memory space> [shape: f32[1], index: 6, kind: input, shape index: {}]
  %s7 = inlined_call_operand.hbm [shape: f32[2,4,256], index: 7, kind: output, shape index: {}]
  %s8 = sld [smem:[#allocation0]]
  $region61: #{tpu_custom_call.1} parent=0
    _
  %s10 = ssub.s32 1, %s8
  %s11 = scalar_select 0, %s10, %s8
  %12 = sst [smem:[#allocation2]] %s6
  $region1: #{tpu_custom_call.1} parent=0
    #allocation3 [shape = 'u8[8192]{0}', space=vmem, size = 0x2000, scoped, tag = 'output window, operand 0']
    #allocation4 [shape = 's32[2]{0}', space=sflag, size = 0x8, scoped, tag = 'scoped memory for tpu_custom_call.1']
    %13 = vsyncpa [#allocation4], 0
    %s14 = scalar_lea.sflag [#allocation4], 1
    %15 = vsyncpa %s14, 0
    loop: start=0, step=1, limit=4
    $region2: #{tpu_custom_call.1} parent=1 // loop_pre_header
      _
    $region3: #{tpu_custom_call.1} parent=1 // loop_header
      %s17 = sphi 0, %s21
      %p18 = scmp.ge.s32.totalorder %s17, 4
      %s24 = sphi 0, %s36
      %s25 = sphi 0, %s32
      %s26 = sphi 0, %s24
      %s27 = sphi 0, %s25
      %s28 = sphi 0, %s26
      %s29 = sphi 0, %s27
      %s41 = sphi 0, %s43
      %s44 = sphi 0, %s41
      %s45 = sphi 0, %s44
      %s61 = sphi 0, %s45
      %s69 = sphi 0, %s71
      %s72 = sphi 0, %s69
      %s73 = sphi 0, %s72
      %s89 = sphi 0, %s73
      %s93 = sphi 0, %s93
      %s95 = sphi 0, %s93
      %s96 = sphi 0, %s95
      %s110 = sphi 0, %s96
      %s114 = sphi 0, %s114
      %s116 = sphi 0, %s114
      %s117 = sphi 0, %s116
      %s131 = sphi 0, %s117
      %s135 = sphi 0, %s135
      %s137 = sphi 0, %s135
      %s138 = sphi 0, %s137
      %s152 = sphi 0, %s138
      %s156 = sphi 0, %s156
      %s158 = sphi 0, %s156
      %s159 = sphi 0, %s158
      %s173 = sphi 0, %s159
      %s177 = sphi 0, %s177
      %s179 = sphi 0, %s177
      %s180 = sphi 0, %s179
      %s194 = sphi 0, %s180
      %s202 = sphi 0, %s204
      %s205 = sphi 0, %s202
      %s206 = sphi 0, %s205
      %s222 = sphi 0, %s206
    $region4: #{tpu_custom_call.1} parent=1 // loop_header_branch
      %20 = sbr.rel (%p18) target = $region8
    $region5: #{tpu_custom_call.1} parent=1 // loop_body
      %s22 = ssub.s32 %s17, 1
      %s23 = ssub.s32 %s17, 2
      %s30 = sadd.s32 1, %s25
      %p31 = scmp.ge.s32.totalorder %s30, 1
      %s32 = scalar_select %p31, 0, %s30
      %s33 = sadd.s32 1, %s24
      %s34 = scalar_select %p31, %s33, %s24
      %p35 = scmp.ge.s32.totalorder %s34, 2
      %s36 = scalar_select %p35, 0, %s34
      %s37 = ssub.s32 %s24, %s36
      %s38 = ssub.s32 %s25, %s32
      %s39 = sor.u32 %s37, %s38
      %p40 = scmp.eq.s32.totalorder %s39, 0
      %s42 = sadd.s32 %s41, 1
      %s43 = scalar_select %p40, %s41, %s42
      %p46 = pneg %p40
      %p47 = scmp.eq.s32.totalorder %s17, 1
      %p48 = por %p46, %p47
      %p49 = scmp.ne.s32.totalorder %s41, %s44
      %p50 = scmp.eq.s32.totalorder %s17, 0
      %p51 = por %p49, %p50
      %p52 = scmp.ne.s32.totalorder %s41, %s44
      %p53 = scmp.eq.s32.totalorder %s22, 1
      %p54 = por %p52, %p53
      %p55 = scmp.ne.s32.totalorder %s44, %s45
      %p56 = scmp.eq.s32.totalorder %s22, 0
      %p57 = por %p55, %p56
      %p58 = scmp.ne.s32.totalorder %s44, %s45
      %p59 = scmp.eq.s32.totalorder %s23, 1
      %p60 = por %p58, %p59
      %p62 = scmp.ne.s32.totalorder %s45, %s61
      %p63 = scmp.eq.s32.totalorder %s23, 0
      %p64 = por %p62, %p63
      %s65 = ssub.s32 %s24, %s36
      %s66 = ssub.s32 %s25, %s32
      %s67 = sor.u32 %s65, %s66
      %p68 = scmp.eq.s32.totalorder %s67, 0
      %s70 = sadd.s32 %s69, 1
      %s71 = scalar_select %p68, %s69, %s70
      %p74 = pneg %p68
      %p75 = scmp.eq.s32.totalorder %s17, 1
      %p76 = por %p74, %p75
      %p77 = scmp.ne.s32.totalorder %s69, %s72
      %p78 = scmp.eq.s32.totalorder %s17, 0
      %p79 = por %p77, %p78
      %p80 = scmp.ne.s32.totalorder %s69, %s72
      %p81 = scmp.eq.s32.totalorder %s22, 1
      %p82 = por %p80, %p81
      %p83 = scmp.ne.s32.totalorder %s72, %s73
      %p84 = scmp.eq.s32.totalorder %s22, 0
      %p85 = por %p83, %p84
      %p86 = scmp.ne.s32.totalorder %s72, %s73
      %p87 = scmp.eq.s32.totalorder %s23, 1
      %p88 = por %p86, %p87
      %p90 = scmp.ne.s32.totalorder %s73, %s89
      %p91 = scmp.eq.s32.totalorder %s23, 0
      %p92 = por %p90, %p91
      %s94 = sadd.s32 %s93, 1
      %p97 = scmp.eq.s32.totalorder %s17, 1
      %p98 = scmp.ne.s32.totalorder %s93, %s95
      %p99 = scmp.eq.s32.totalorder %s17, 0
      %p100 = por %p98, %p99
      %p101 = scmp.ne.s32.totalorder %s93, %s95
      %p102 = scmp.eq.s32.totalorder %s22, 1
      %p103 = por %p101, %p102
      %p104 = scmp.ne.s32.totalorder %s95, %s96
      %p105 = scmp.eq.s32.totalorder %s22, 0
      %p106 = por %p104, %p105
      %p107 = scmp.ne.s32.totalorder %s95, %s96
      %p108 = scmp.eq.s32.totalorder %s23, 1
      %p109 = por %p107, %p108
      %p111 = scmp.ne.s32.totalorder %s96, %s110
      %p112 = scmp.eq.s32.totalorder %s23, 0
      %p113 = por %p111, %p112
      %s115 = sadd.s32 %s114, 1
      %p118 = scmp.eq.s32.totalorder %s17, 1
      %p119 = scmp.ne.s32.totalorder %s114, %s116
      %p120 = scmp.eq.s32.totalorder %s17, 0
      %p121 = por %p119, %p120
      %p122 = scmp.ne.s32.totalorder %s114, %s116
      %p123 = scmp.eq.s32.totalorder %s22, 1
      %p124 = por %p122, %p123
      %p125 = scmp.ne.s32.totalorder %s116, %s117
      %p126 = scmp.eq.s32.totalorder %s22, 0
      %p127 = por %p125, %p126
      %p128 = scmp.ne.s32.totalorder %s116, %s117
      %p129 = scmp.eq.s32.totalorder %s23, 1
      %p130 = por %p128, %p129
      %p132 = scmp.ne.s32.totalorder %s117, %s131
      %p133 = scmp.eq.s32.totalorder %s23, 0
      %p134 = por %p132, %p133
      %s136 = sadd.s32 %s135, 1
      %p139 = scmp.eq.s32.totalorder %s17, 1
      %p140 = scmp.ne.s32.totalorder %s135, %s137
      %p141 = scmp.eq.s32.totalorder %s17, 0
      %p142 = por %p140, %p141
      %p143 = scmp.ne.s32.totalorder %s135, %s137
      %p144 = scmp.eq.s32.totalorder %s22, 1
      %p145 = por %p143, %p144
      %p146 = scmp.ne.s32.totalorder %s137, %s138
      %p147 = scmp.eq.s32.totalorder %s22, 0
      %p148 = por %p146, %p147
      %p149 = scmp.ne.s32.totalorder %s137, %s138
      %p150 = scmp.eq.s32.totalorder %s23, 1
      %p151 = por %p149, %p150
      %p153 = scmp.ne.s32.totalorder %s138, %s152
      %p154 = scmp.eq.s32.totalorder %s23, 0
      %p155 = por %p153, %p154
      %s157 = sadd.s32 %s156, 1
      %p160 = scmp.eq.s32.totalorder %s17, 1
      %p161 = scmp.ne.s32.totalorder %s156, %s158
      %p162 = scmp.eq.s32.totalorder %s17, 0
      %p163 = por %p161, %p162
      %p164 = scmp.ne.s32.totalorder %s156, %s158
      %p165 = scmp.eq.s32.totalorder %s22, 1
      %p166 = por %p164, %p165
      %p167 = scmp.ne.s32.totalorder %s158, %s159
      %p168 = scmp.eq.s32.totalorder %s22, 0
      %p169 = por %p167, %p168
      %p170 = scmp.ne.s32.totalorder %s158, %s159
      %p171 = scmp.eq.s32.totalorder %s23, 1
      %p172 = por %p170, %p171
      %p174 = scmp.ne.s32.totalorder %s159, %s173
      %p175 = scmp.eq.s32.totalorder %s23, 0
      %p176 = por %p174, %p175
      %s178 = sadd.s32 %s177, 1
      %p181 = scmp.eq.s32.totalorder %s17, 1
      %p182 = scmp.ne.s32.totalorder %s177, %s179
      %p183 = scmp.eq.s32.totalorder %s17, 0
      %p184 = por %p182, %p183
      %p185 = scmp.ne.s32.totalorder %s177, %s179
      %p186 = scmp.eq.s32.totalorder %s22, 1
      %p187 = por %p185, %p186
      %p188 = scmp.ne.s32.totalorder %s179, %s180
      %p189 = scmp.eq.s32.totalorder %s22, 0
      %p190 = por %p188, %p189
      %p191 = scmp.ne.s32.totalorder %s179, %s180
      %p192 = scmp.eq.s32.totalorder %s23, 1
      %p193 = por %p191, %p192
      %p195 = scmp.ne.s32.totalorder %s180, %s194
      %p196 = scmp.eq.s32.totalorder %s23, 0
      %p197 = por %p195, %p196
      %s198 = ssub.s32 %s24, %s36
      %s199 = ssub.s32 %s25, %s32
      %s200 = sor.u32 %s198, %s199
      %p201 = scmp.eq.s32.totalorder %s200, 0
      %s203 = sadd.s32 %s202, 1
      %s204 = scalar_select %p201, %s202, %s203
      %p207 = pneg %p201
      %p208 = scmp.eq.s32.totalorder %s17, 1
      %p209 = por %p207, %p208
      %p210 = scmp.ne.s32.totalorder %s202, %s205
      %p211 = scmp.eq.s32.totalorder %s17, 0
      %p212 = por %p210, %p211
      %p213 = scmp.ne.s32.totalorder %s202, %s205
      %p214 = scmp.eq.s32.totalorder %s22, 1
      %p215 = por %p213, %p214
      %p216 = scmp.ne.s32.totalorder %s205, %s206
      %p217 = scmp.eq.s32.totalorder %s22, 0
      %p218 = por %p216, %p217
      %p219 = scmp.ne.s32.totalorder %s205, %s206
      %p220 = scmp.eq.s32.totalorder %s23, 1
      %p221 = por %p219, %p220
      %p223 = scmp.ne.s32.totalorder %s206, %s222
      %p224 = scmp.eq.s32.totalorder %s23, 0
      %p225 = por %p223, %p224
      %p226 = scmp.le.s32.totalorder 1, %s17
      %p227 = scmp.lt.s32.totalorder %s17, 3
      %p228 = pnand %p226, %p227
      %p229 = pneg %p228
      // Predicated region
      $region9: #{tpu_custom_call.1} parent=5 // pred_check
        _
      $region10: #{tpu_custom_call.1} parent=5 // pred_check_branch
        %231 = sbr.rel (%p228) target = $region12
      $region11: #{tpu_custom_call.1} parent=5 // pred_region
        %s232 = ssub.s32 %s17, 1
        // Predicated region
        $region13: #{tpu_custom_call.1} parent=11 // pred_check
          %p233 = pneg %p106
        $region14: #{tpu_custom_call.1} parent=11 // pred_check_branch
          %235 = sbr.rel (%p233) target = $region16
        $region15: #{tpu_custom_call.1} parent=11 // pred_region
          _
        $region16: #{tpu_custom_call.1} parent=11 // pred_fallthru
          _
        // Predicated region
        $region17: #{tpu_custom_call.1} parent=11 // pred_check
          %p236 = pneg %p127
        $region18: #{tpu_custom_call.1} parent=11 // pred_check_branch
          %238 = sbr.rel (%p236) target = $region20
        $region19: #{tpu_custom_call.1} parent=11 // pred_region
          _
        $region20: #{tpu_custom_call.1} parent=11 // pred_fallthru
          _
        // Predicated region
        $region21: #{tpu_custom_call.1} parent=11 // pred_check
          %p239 = pneg %p148
        $region22: #{tpu_custom_call.1} parent=11 // pred_check_branch
          %241 = sbr.rel (%p239) target = $region24
        $region23: #{tpu_custom_call.1} parent=11 // pred_region
          _
        $region24: #{tpu_custom_call.1} parent=11 // pred_fallthru
          _
        // Predicated region
        $region25: #{tpu_custom_call.1} parent=11 // pred_check
          %p242 = pneg %p169
        $region26: #{tpu_custom_call.1} parent=11 // pred_check_branch
          %244 = sbr.rel (%p242) target = $region28
        $region27: #{tpu_custom_call.1} parent=11 // pred_region
          _
        $region28: #{tpu_custom_call.1} parent=11 // pred_fallthru
          _
        // Predicated region
        $region29: #{tpu_custom_call.1} parent=11 // pred_check
          %p245 = pneg %p190
        $region30: #{tpu_custom_call.1} parent=11 // pred_check_branch
          %247 = sbr.rel (%p245) target = $region32
        $region31: #{tpu_custom_call.1} parent=11 // pred_region
          _
        $region32: #{tpu_custom_call.1} parent=11 // pred_fallthru
          _
      $region12: #{tpu_custom_call.1} parent=5 // pred_fallthru
        _
      %p248 = scmp.lt.s32.totalorder %s17, 2
      // Predicated region
      $region33: #{tpu_custom_call.1} parent=5 // pred_check
        %p249 = pneg %p248
      $region34: #{tpu_custom_call.1} parent=5 // pred_check_branch
        %251 = sbr.rel (%p249) target = $region36
      $region35: #{tpu_custom_call.1} parent=5 // pred_region
        // Predicated region
        $region37: #{tpu_custom_call.1} parent=35 // pred_check
          %p252 = pneg %p51
        $region38: #{tpu_custom_call.1} parent=35 // pred_check_branch
          %254 = sbr.rel (%p252) target = $region40
        $region39: #{tpu_custom_call.1} parent=35 // pred_region
          %s255 = smul.u32 2, %s25
          %p256 = scmp.lt.s32.totalorder %s24, 1
          %s257 = scalar_select %p256, %s24, 1
          %p258 = scmp.lt.s32.totalorder %s255, 1
          %s259 = scalar_select %p258, %s255, 1
          %s260 = smul.addr %s257, 2
          %s261 = sadd.s32 %s259, %s260
          %s262 = smul.addr %s261, 4
          %s263 = scalar_lea.vmem %s0, %s262
          %s264 = smul.u32 2, %s25
        $region40: #{tpu_custom_call.1} parent=35 // pred_fallthru
          _
        // Predicated region
        $region41: #{tpu_custom_call.1} parent=35 // pred_check
          %p265 = pneg %p79
        $region42: #{tpu_custom_call.1} parent=35 // pred_check_branch
          %267 = sbr.rel (%p265) target = $region44
        $region43: #{tpu_custom_call.1} parent=35 // pred_region
          %s268 = smul.u32 2, %s25
          %p269 = scmp.lt.s32.totalorder %s24, 1
          %s270 = scalar_select %p269, %s24, 1
          %p271 = scmp.lt.s32.totalorder %s268, 1
          %s272 = scalar_select %p271, %s268, 1
          %s273 = smul.addr %s270, 2
          %s274 = sadd.s32 %s272, %s273
          %s275 = smul.addr %s274, 4
          %s276 = scalar_lea.vmem %s1, %s275
          %s277 = smul.u32 2, %s25
        $region44: #{tpu_custom_call.1} parent=35 // pred_fallthru
          _
      $region36: #{tpu_custom_call.1} parent=5 // pred_fallthru
        _
      %p278 = scmp.le.s32.totalorder 1, %s17
      %p279 = scmp.lt.s32.totalorder %s17, 3
      %p280 = pnand %p278, %p279
      %p281 = pneg %p280
      // Predicated region
      $region45: #{tpu_custom_call.1} parent=5 // pred_check
        _
      $region46: #{tpu_custom_call.1} parent=5 // pred_check_branch
        %283 = sbr.rel (%p280) target = $region48
      $region47: #{tpu_custom_call.1} parent=5 // pred_region
        %s284 = ssub.s32 %s17, 1
        %s285 = smul.u32 2, %s27
        %p286 = scmp.lt.s32.totalorder %s26, 1
        %s287 = scalar_select %p286, %s26, 1
        %p288 = scmp.lt.s32.totalorder %s285, 1
        %s289 = scalar_select %p288, %s285, 1
        %s290 = smul.addr %s287, 2
        %s291 = sadd.s32 %s289, %s290
        %s292 = smul.addr %s291, 4
        %s293 = scalar_lea.vmem %s0, %s292
        %p294 = pneg %p57
        %p295 = pneg %p54
        %s296 = smul.u32 2, %s27
        %p297 = scmp.lt.s32.totalorder %s26, 1
        %s298 = scalar_select %p297, %s26, 1
        %p299 = scmp.lt.s32.totalorder %s296, 1
        %s300 = scalar_select %p299, %s296, 1
        %s301 = smul.addr %s298, 2
        %s302 = sadd.s32 %s300, %s301
        %s303 = smul.addr %s302, 4
        %s304 = scalar_lea.vmem %s1, %s303
        %p305 = pneg %p85
        %p306 = pneg %p82
        %p307 = pneg %p106
        %p308 = pneg %p103
        %p309 = pneg %p127
        %p310 = pneg %p124
        %p311 = pneg %p148
        %p312 = pneg %p145
        %p313 = pneg %p169
        %p314 = pneg %p166
        %p315 = pneg %p190
        %p316 = pneg %p187
        %p317 = pneg %p218
        %p318 = pneg %p215
        %s319 = sand.u32 %s205, 1
        %s320 = scalar_lea.sflag [#allocation4], %s319
        %s321 = sand.u32 %s205, 1
        %s322 = smul.addr %s321, 8
        %s323 = scalar_lea.vmem [#allocation3], %s322
        %s324 = smul.u32 2, %s27
        %p325 = scmp.lt.s32.totalorder %s26, 1
        %s326 = scalar_select %p325, %s26, 1
        %p327 = scmp.lt.s32.totalorder %s324, 1
        %s328 = scalar_select %p327, %s324, 1
        %s329 = smul.addr %s326, 2
        %s330 = sadd.s32 %s328, %s329
        %s331 = smul.addr %s330, 4
        %s332 = scalar_lea.vmem %s0, %s331
        %s333 = smul.u32 2, %s27
        %s334 = smul.u32 2, %s27
        %p335 = scmp.lt.s32.totalorder %s26, 1
        %s336 = scalar_select %p335, %s26, 1
        %p337 = scmp.lt.s32.totalorder %s334, 1
        %s338 = scalar_select %p337, %s334, 1
        %s339 = smul.addr %s336, 2
        %s340 = sadd.s32 %s338, %s339
        %s341 = smul.addr %s340, 4
        %s342 = scalar_lea.vmem %s1, %s341
        %s343 = smul.u32 2, %s27
        %s344 = smul.u32 2, %s27
        %v345 = vld [vmem:[%s2] sm:$0xff]
        %v346 = vld [vmem:[%s2 + $0x8] sm:$0xff]
        %v347 = vld [vmem:[%s2 + $0x10] sm:$0xff]
        %v348 = vld [vmem:[%s2 + $0x18] sm:$0xff]
        %v349 = vld [vmem:[%s3] sm:$0xff]
        %v350 = vld [vmem:[%s3 + $0x8] sm:$0xff]
        %v351 = vld [vmem:[%s3 + $0x10] sm:$0xff]
        %v352 = vld [vmem:[%s3 + $0x18] sm:$0xff]
        %v353 = vld [vmem:[%s4] sm:$0xff]
        %v354 = vld [vmem:[%s4 + $0x8] sm:$0xff]
        %v355 = vld [vmem:[%s4 + $0x10] sm:$0xff]
        %v356 = vld [vmem:[%s4 + $0x18] sm:$0xff]
        %v357 = vld [vmem:[%s5] sm:$0xff]
        %v358 = vld [vmem:[%s5 + $0x8] sm:$0xff]
        %v359 = vld [vmem:[%s5 + $0x10] sm:$0xff]
        %v360 = vld [vmem:[%s5 + $0x18] sm:$0xff]
        %s361 = sld [smem:[#allocation2]]
        %v362 = vld [vmem:[%s332] sm:$0xff]
        %v363 = vld [vmem:[%s342] sm:$0xff]
        %365 = vst [vmem:[#allocation1] ss:$2 sm:$0xff] %v363
        %v366 = vld.sshfl [vmem:[#allocation1] sm:$0xff pattern:$0x75316420]
        %v367 = vld.sshfl [vmem:[#allocation1 + $0x8] sm:$0xff pattern:$0x75316420]
        %vm368 = vcmask 31744
        %v370 = vsel %vm368, %v349, 0
        %v373 = vsel %vm368, %v350, 0
        %v376 = vsel %vm368, %v351, 0
        %v379 = vsel %vm368, %v352, 0
        %vm381 = vcmask 1043456
        %v382 = vsel %vm381, %v366, 0
        %v384 = vsel %vm381, %v367, 0
        %386 = vmatpush.msra.mxu0 0.0
        %387 = vmatpush.msra.mxu0 0.0
        %388 = vmatpush.msra.mxu0 0.0
        %389 = vmatpush.msra.mxu0 0.0
        %390 = vmatpush.msra.mxu0 0.0
        %391 = vmatpush.msra.mxu0 0.0
        %392 = vmatpush.msra.mxu0 0.0
        %393 = vmatpush.msra.mxu0 0.0
        %394 = vmatpush.msra.mxu0 0.0
        %395 = vmatpush.msra.mxu0 0.0
        %396 = vmatpush.msra.mxu0 0.0
        %397 = vmatpush.msra.mxu0 0.0
        %398 = vmatpush.msra.mxu0 0.0
        %399 = vmatpush.msra.mxu0 0.0
        %400 = vmatpush.msra.mxu0 0.0
        %401 = vmatpush.msra.mxu0 %v382
        %402 = vmatmul.f32.gmra.mxu0 %v370
        %v403 = vpop.f32.mrf.mxu0
        %v404 = vadd.f32 0.0, %v403
        %405 = vmatmul.f32.gmra.mxu0 %v373
        %v406 = vpop.f32.mrf.mxu0
        %v407 = vadd.f32 0.0, %v406
        %408 = vmatmul.f32.gmra.mxu0 %v376
        %v409 = vpop.f32.mrf.mxu0
        %v410 = vadd.f32 0.0, %v409
        %411 = vmatmul.f32.gmra.mxu0 %v379
        %v412 = vpop.f32.mrf.mxu0
        %v413 = vadd.f32 0.0, %v412
        %414 = vdwg.mxu0
        %415 = vmatpush.msra.mxu0 0.0
        %416 = vmatpush.msra.mxu0 0.0
        %417 = vmatpush.msra.mxu0 0.0
        %418 = vmatpush.msra.mxu0 0.0
        %419 = vmatpush.msra.mxu0 0.0
        %420 = vmatpush.msra.mxu0 0.0
        %421 = vmatpush.msra.mxu0 0.0
        %422 = vmatpush.msra.mxu0 0.0
        %423 = vmatpush.msra.mxu0 0.0
        %424 = vmatpush.msra.mxu0 0.0
        %425 = vmatpush.msra.mxu0 0.0
        %426 = vmatpush.msra.mxu0 0.0
        %427 = vmatpush.msra.mxu0 0.0
        %428 = vmatpush.msra.mxu0 0.0
        %429 = vmatpush.msra.mxu0 0.0
        %430 = vmatpush.msra.mxu0 %v384
        %431 = vmatmul.f32.gmra.mxu0 %v370
        %v432 = vpop.f32.mrf.mxu0
        %v433 = vadd.f32 0.0, %v432
        %434 = vmatmul.f32.gmra.mxu0 %v373
        %v435 = vpop.f32.mrf.mxu0
        %v436 = vadd.f32 0.0, %v435
        %437 = vmatmul.f32.gmra.mxu0 %v376
        %v438 = vpop.f32.mrf.mxu0
        %v439 = vadd.f32 0.0, %v438
        %440 = vmatmul.f32.gmra.mxu0 %v379
        %v441 = vpop.f32.mrf.mxu0
        %v442 = vadd.f32 0.0, %v441
        %443 = vdwg.mxu0
        %445 = vst [vmem:[#allocation1] ss:$2 sm:$0xff] %v362
        %v446 = vld.sshfl [vmem:[#allocation1] sm:$0xff pattern:$0x75316420]
        %v447 = vld.sshfl [vmem:[#allocation1 + $0x8] sm:$0xff pattern:$0x75316420]
        %v449 = vsel %vm368, %v345, 0
        %v452 = vsel %vm368, %v346, 0
        %v455 = vsel %vm368, %v347, 0
        %v458 = vsel %vm368, %v348, 0
        %v460 = vsel %vm381, %v446, 0
        %v462 = vsel %vm381, %v447, 0
        %464 = vmatpush.msra.mxu0 0.0
        %465 = vmatpush.msra.mxu0 0.0
        %466 = vmatpush.msra.mxu0 0.0
        %467 = vmatpush.msra.mxu0 0.0
        %468 = vmatpush.msra.mxu0 0.0
        %469 = vmatpush.msra.mxu0 0.0
        %470 = vmatpush.msra.mxu0 0.0
        %471 = vmatpush.msra.mxu0 0.0
        %472 = vmatpush.msra.mxu0 0.0
        %473 = vmatpush.msra.mxu0 0.0
        %474 = vmatpush.msra.mxu0 0.0
        %475 = vmatpush.msra.mxu0 0.0
        %476 = vmatpush.msra.mxu0 0.0
        %477 = vmatpush.msra.mxu0 0.0
        %478 = vmatpush.msra.mxu0 0.0
        %479 = vmatpush.msra.mxu0 %v460
        %480 = vmatmul.f32.gmra.mxu0 %v449
        %v481 = vpop.f32.mrf.mxu0
        %v482 = vadd.f32 %v404, %v481
        %483 = vmatmul.f32.gmra.mxu0 %v452
        %v484 = vpop.f32.mrf.mxu0
        %v485 = vadd.f32 %v407, %v484
        %486 = vmatmul.f32.gmra.mxu0 %v455
        %v487 = vpop.f32.mrf.mxu0
        %v488 = vadd.f32 %v410, %v487
        %489 = vmatmul.f32.gmra.mxu0 %v458
        %v490 = vpop.f32.mrf.mxu0
        %v491 = vadd.f32 %v413, %v490
        %492 = vdwg.mxu0
        %493 = vmatpush.msra.mxu0 0.0
        %494 = vmatpush.msra.mxu0 0.0
        %495 = vmatpush.msra.mxu0 0.0
        %496 = vmatpush.msra.mxu0 0.0
        %497 = vmatpush.msra.mxu0 0.0
        %498 = vmatpush.msra.mxu0 0.0
        %499 = vmatpush.msra.mxu0 0.0
        %500 = vmatpush.msra.mxu0 0.0
        %501 = vmatpush.msra.mxu0 0.0
        %502 = vmatpush.msra.mxu0 0.0
        %503 = vmatpush.msra.mxu0 0.0
        %504 = vmatpush.msra.mxu0 0.0
        %505 = vmatpush.msra.mxu0 0.0
        %506 = vmatpush.msra.mxu0 0.0
        %507 = vmatpush.msra.mxu0 0.0
        %508 = vmatpush.msra.mxu0 %v462
        %509 = vmatmul.f32.gmra.mxu0 %v449
        %v510 = vpop.f32.mrf.mxu0
        %v511 = vadd.f32 %v433, %v510
        %512 = vmatmul.f32.gmra.mxu0 %v452
        %v513 = vpop.f32.mrf.mxu0
        %v514 = vadd.f32 %v436, %v513
        %515 = vmatmul.f32.gmra.mxu0 %v455
        %v516 = vpop.f32.mrf.mxu0
        %v517 = vadd.f32 %v439, %v516
        %518 = vmatmul.f32.gmra.mxu0 %v458
        %v519 = vpop.f32.mrf.mxu0
        %v520 = vadd.f32 %v442, %v519
        %521 = vdwg.mxu0
        %523 = vset.pattern.permute.xlu0 0
        %524 = vperm.xlu0 %523, %v353
        %v525 = vpop.permute.xlu0 %524
        %528 = vset.pattern.permute.xlu0 0
        %529 = vperm.xlu0 %528, %v354
        %v530 = vpop.permute.xlu0 %529
        %533 = vset.pattern.permute.xlu0 0
        %534 = vperm.xlu0 %533, %v355
        %v535 = vpop.permute.xlu0 %534
        %538 = vset.pattern.permute.xlu0 0
        %539 = vperm.xlu0 %538, %v356
        %v540 = vpop.permute.xlu0 %539
        %v542 = vadd.f32 %v482, %v525
        %v543 = vadd.f32 %v511, %v525
        %v544 = vadd.f32 %v485, %v530
        %v545 = vadd.f32 %v514, %v530
        %v546 = vadd.f32 %v488, %v535
        %v547 = vadd.f32 %v517, %v535
        %v548 = vadd.f32 %v491, %v540
        %v549 = vadd.f32 %v520, %v540
        %v550 = vmax.f32 %v542, 0.0
        %v551 = vmax.f32 %v543, 0.0
        %v552 = vmax.f32 %v544, 0.0
        %v553 = vmax.f32 %v545, 0.0
        %v554 = vmax.f32 %v546, 0.0
        %v555 = vmax.f32 %v547, 0.0
        %v556 = vmax.f32 %v548, 0.0
        %v557 = vmax.f32 %v549, 0.0
        %559 = vset.pattern.permute.xlu0 0
        %560 = vperm.xlu0 %559, %v357
        %v561 = vpop.permute.xlu0 %560
        %564 = vset.pattern.permute.xlu0 0
        %565 = vperm.xlu0 %564, %v358
        %v566 = vpop.permute.xlu0 %565
        %569 = vset.pattern.permute.xlu0 0
        %570 = vperm.xlu0 %569, %v359
        %v571 = vpop.permute.xlu0 %570
        %574 = vset.pattern.permute.xlu0 0
        %575 = vperm.xlu0 %574, %v360
        %v576 = vpop.permute.xlu0 %575
        %v578 = vmul.f32 %v550, %v561
        %v579 = vmul.f32 %v551, %v561
        %v580 = vmul.f32 %v552, %v566
        %v581 = vmul.f32 %v553, %v566
        %v582 = vmul.f32 %v554, %v571
        %v583 = vmul.f32 %v555, %v571
        %v584 = vmul.f32 %v556, %v576
        %v585 = vmul.f32 %v557, %v576
        %v586 = vadd.f32 %v578, %v580
        %v587 = vadd.f32 %v586, %v582
        %v588 = vadd.f32 %v587, %v584
        %v589 = vrot.slane %v588, 4
        %v590 = vadd.f32 %v588, %v589
        %v591 = vrot.slane %v590, 2
        %v592 = vadd.f32 %v590, %v591
        %v593 = vrot.slane %v592, 1
        %v594 = vadd.f32 %v592, %v593
        %v595 = vadd.f32 %v579, %v581
        %v596 = vadd.f32 %v595, %v583
        %v597 = vadd.f32 %v596, %v585
        %v598 = vrot.slane %v597, 4
        %v599 = vadd.f32 %v597, %v598
        %v600 = vrot.slane %v599, 2
        %v601 = vadd.f32 %v599, %v600
        %v602 = vrot.slane %v601, 1
        %v603 = vadd.f32 %v601, %v602
        %v604 = vstv %s361
        %v605 = vadd.f32 %v594, %v604
        %v606 = vadd.f32 %v603, %v604
        %v607 = vxor.u32 %v605, 2147483648
        %v608 = vxor.u32 %v606, 2147483648
        %v609 = vmul.f32 %v607, 1.442695
        %v610 = vpow.pop %v609
        %v611 = vmul.f32 %v608, 1.442695
        %v612 = vpow.pop %v611
        %v613 = vadd.f32 %v610, 1.0
        %v614 = vadd.f32 %v612, 1.0
        %v615 = vrcp.pop %v613
        %v616 = vmul.f32 %v613, %v615
        %v617 = vsub.f32 1.0, %v616
        %v618 = vmul.f32 %v615, %v617
        %v619 = vadd.f32 %v615, %v618
        %vm620 = vweird.f32 %v613
        %vm621 = vweird.f32 %v615
        %vm622 = vmor %vm620, %vm621
        %v623 = vsel %vm622, %v615, %v619
        %v624 = vand.u32 2147483647, %v613
        %vm625 = vcmp.eq.f32.partialorder %v624, 8.507059e+37
        %v626 = vand.u32 %v613, 2147483648
        %v627 = vor.u32 1.1754944e-38, %v626
        %v628 = vsel %vm625, %v627, %v623
        %v629 = vmul.f32 1.0, %v628
        %v630 = vrcp.pop %v614
        %v631 = vmul.f32 %v614, %v630
        %v632 = vsub.f32 1.0, %v631
        %v633 = vmul.f32 %v630, %v632
        %v634 = vadd.f32 %v630, %v633
        %vm635 = vweird.f32 %v614
        %vm636 = vweird.f32 %v630
        %vm637 = vmor %vm635, %vm636
        %v638 = vsel %vm637, %v630, %v634
        %v639 = vand.u32 2147483647, %v614
        %vm640 = vcmp.eq.f32.partialorder %v639, 8.507059e+37
        %v641 = vand.u32 %v614, 2147483648
        %v642 = vor.u32 1.1754944e-38, %v641
        %v643 = vsel %vm640, %v642, %v638
        %v644 = vmul.f32 1.0, %v643
        %v647 = vrot.slane %v644, 4
        %v648 = vsel %vm381, %v629, %v647
        %v650 = vmul.f32 %v363, %v648
        %651 = vst [vmem:[%s323] sm:$0xff] %v650
        %s652 = sand.u32 %s205, 1
        %s653 = scalar_lea.sflag [#allocation4], %s652
        %s654 = sand.u32 %s205, 1
        %s655 = smul.addr %s654, 8
        %s656 = scalar_lea.vmem [#allocation3], %s655
        // Predicated region
        $region49: #{tpu_custom_call.1} parent=47 // pred_check
          %p657 = pneg %p215
        $region50: #{tpu_custom_call.1} parent=47 // pred_check_branch
          %659 = sbr.rel (%p657) target = $region52
        $region51: #{tpu_custom_call.1} parent=47 // pred_region
          %s660 = smul.u32 2, %s27
          %662 = vsyncadd %s653, 0
          %s663 = smul.addr %s26, 2
          %s664 = sadd.s32 %s660, %s663
          %s665 = smul.addr %s664, 4
          %s666 = scalar_lea.hbm %s7, %s665
          %s668 = sshll.u32 %s656, 4
          %s669 = int_to_ptr.vmem [resolvable:$true] %s668
          %s670 = sshll.u32 %s666, 4
          %s671 = int_to_ptr.hbm [resolvable:$true] %s670
          %673 = dma.vmem_to_hbm [thread:$0]  %s669, 128, %s671, %s653
        $region52: #{tpu_custom_call.1} parent=47 // pred_fallthru
          _
      $region48: #{tpu_custom_call.1} parent=5 // pred_fallthru
        _
      %p674 = scmp.le.s32.totalorder 2, %s17
      // Predicated region
      $region53: #{tpu_custom_call.1} parent=5 // pred_check
        %p675 = pneg %p674
      $region54: #{tpu_custom_call.1} parent=5 // pred_check_branch
        %677 = sbr.rel (%p675) target = $region56
      $region55: #{tpu_custom_call.1} parent=5 // pred_region
        %s678 = ssub.s32 %s17, 2
        // Predicated region
        $region57: #{tpu_custom_call.1} parent=55 // pred_check
          %p679 = pneg %p221
        $region58: #{tpu_custom_call.1} parent=55 // pred_check_branch
          %681 = sbr.rel (%p679) target = $region60
        $region59: #{tpu_custom_call.1} parent=55 // pred_region
          %s682 = sand.u32 %s206, 1
          %s683 = scalar_lea.sflag [#allocation4], %s682
          %s684 = sand.u32 %s206, 1
          %s685 = smul.addr %s684, 8
          %s686 = scalar_lea.vmem [#allocation3], %s685
          %688 = dma.done %s683, 128
        $region60: #{tpu_custom_call.1} parent=55 // pred_fallthru
          _
      $region56: #{tpu_custom_call.1} parent=5 // pred_fallthru
        _
    $region6: #{tpu_custom_call.1} parent=1 // loop_footer
      %s21 = sadd.s32 1, %s17
    $region7: #{tpu_custom_call.1} parent=1 // loop_footer_branch
      %16 = sbr.rel target = $region3
    $region8: #{tpu_custom_call.1} parent=1 // loop_exit
      _
    %689 = vsyncpa [#allocation4], 1
    %s690 = scalar_lea.sflag [#allocation4], 1
    %691 = vsyncpa %s690, 1

</llo_original>
